<compile_context>
chip_gen: v5e
topology: v5e:2x2
jax: 0.10.0
libtpu: 0.0.40
codegen_flags: <defaults>
</compile_context>

<pallas_src>
import numpy as np
import jax
import jax.numpy as jnp
from jax import lax
from jax.experimental import pallas as pl
from jax.experimental.pallas import tpu as pltpu

# ---- model hyper-parameters (args) ----
BATCH = 8
SEQ_LEN = 8
OBS_LEN = 4
PRE_LEN = 2
NUM_EDGES = 32
DIRECTION = 8
EDGE_DIM = 16
DIRECTION_DIM = 16   # model relies on elementwise mult of link/direction embs -> equals EDGE_DIM
HIDDEN_DIM = 32

PAD_H = 128                                   # everything lane-padded to full 128-lane vregs
LINK_ROWS = 40                                # (NUM_EDGES+1)=33 padded to sublane multiple
DIR_ROWS = 16                                 # (DIRECTION+1)=9 padded to sublane multiple
OH_COLS = OBS_LEN * LINK_ROWS + OBS_LEN * DIR_ROWS        # 224: folded fc1 contraction dim
TAILS_ROWS = 128
DLAB_ROWS = 40
LAMBDAS = tuple(float(i + 1) / PRE_LEN for i in range(PRE_LEN))   # lambda_distance init values
CORRECT_LANE = PRE_LEN * NUM_EDGES            # lane 64 of the output slab carries `correct`
NEG_BIG = -1e30                               # bias for padded logit lanes (never the max)

# ---- parameter-slab row offsets (all blocks 8-row aligned, 128 lanes wide) ----
OFF_W1 = 0                                    # 224 rows: folded ED-tables @ fc1
OFF_BIAS = OFF_W1 + OH_COLS                   # 8 rows: row0=b1, row1=b2, row2=b34
OFF_W2 = OFF_BIAS + 8                         # 128 rows
OFF_W34 = OFF_W2 + PAD_H                      # 128 rows: fc3 folded into out layer
OFF_LINK = OFF_W34 + PAD_H                    # 40 rows: link_emb
OFF_DEMB = OFF_LINK + LINK_ROWS               # 16 rows: direction_emb
OFF_DH = OFF_DEMB + DIR_ROWS                  # 16 rows: direction_hyper
OFF_TAILS = OFF_DH + DIR_ROWS                 # 128 rows: lambda-scaled transposed tails
OFF_DLAB = OFF_TAILS + TAILS_ROWS             # 40 rows: loc_dlabels
SLAB_ROWS = OFF_DLAB + DLAB_ROWS              # 728


# ---------------- fused Pallas kernel ----------------

def _fused_kernel(idx_ref, par_ref, out_ref):
    f32 = jnp.float32
    B = idx_ref.shape[0]

    # hoisted iotas (JAX does not CSE broadcast_in_dim)
    iota_oh = lax.broadcasted_iota(jnp.int32, (B, OH_COLS), 1)
    iota_link = lax.broadcasted_iota(jnp.int32, (B, LINK_ROWS), 1)
    iota_dir = lax.broadcasted_iota(jnp.int32, (B, DIR_ROWS), 1)
    iota128 = lax.broadcasted_iota(jnp.int32, (B, PAD_H), 1)

    # --- folded d_predictor input: one (B, 224) one-hot, single MXU push through w1_fold
    oh = jnp.zeros((B, OH_COLS), f32)
    for t in range(OBS_LEN):                                         # link obs window
        v = idx_ref[:, SEQ_LEN - OBS_LEN + t:SEQ_LEN - OBS_LEN + t + 1]
        oh += (iota_oh == v + t * LINK_ROWS).astype(f32)
    for t in range(OBS_LEN):                                         # direction obs window
        v = idx_ref[:, 2 * SEQ_LEN - OBS_LEN + t:2 * SEQ_LEN - OBS_LEN + t + 1]
        oh += (iota_oh == v + OBS_LEN * LINK_ROWS + t * DIR_ROWS).astype(f32)

    w1 = par_ref[OFF_W1:OFF_W1 + OH_COLS, :]
    b1 = par_ref[OFF_BIAS:OFF_BIAS + 1, :]
    b2 = par_ref[OFF_BIAS + 1:OFF_BIAS + 2, :]
    b34 = par_ref[OFF_BIAS + 2:OFF_BIAS + 3, :]
    w2 = par_ref[OFF_W2:OFF_W2 + PAD_H, :]
    w34 = par_ref[OFF_W34:OFF_W34 + PAD_H, :]

    h = jnp.maximum(jnp.dot(oh, w1, preferred_element_type=f32) + b1, 0.0)
    h = jnp.maximum(jnp.dot(h, w2, preferred_element_type=f32) + b2, 0.0)
    logits = jnp.dot(h, w34, preferred_element_type=f32) + b34       # (B,128); pad lanes = -1e30

    # --- predicted goal direction (first-max, matches torch.max / argmax of softmax)
    row_max = jnp.max(logits, axis=1, keepdims=True)
    col_f = iota128.astype(f32)
    pred_f = jnp.min(jnp.where(logits == row_max, col_f, float(PAD_H)),
                     axis=1, keepdims=True)                          # (B,1) f32 in [0, DIRECTION)
    pred = pred_f.astype(jnp.int32)

    # --- label = loc_dlabels[last_obs - 1, goal]  and the `correct` count
    last_obs = idx_ref[:, SEQ_LEN - 1:SEQ_LEN]                       # (B,1)
    goal = idx_ref[:, 2 * SEQ_LEN:2 * SEQ_LEN + 1]                   # (B,1)
    dlab = par_ref[OFF_DLAB:OFF_DLAB + DLAB_ROWS, :]
    rows = jnp.dot((iota_link == last_obs - 1).astype(f32), dlab,
                   preferred_element_type=f32)                       # (B,128)
    label = jnp.sum(rows * (iota128 == goal).astype(f32), axis=1, keepdims=True)
    corr = jnp.sum((pred_f == label).astype(f32))                    # scalar (exact small int)

    # --- TransH: one-hot gathers on the MXU, hyperplane projection, fused scoring
    link_tab = par_ref[OFF_LINK:OFF_LINK + LINK_ROWS, :]
    demb_tab = par_ref[OFF_DEMB:OFF_DEMB + DIR_ROWS, :]
    dh_tab = par_ref[OFF_DH:OFF_DH + DIR_ROWS, :]
    tails_lam = par_ref[OFF_TAILS:OFF_TAILS + TAILS_ROWS, :]

    link_e = jnp.dot((iota_link == last_obs).astype(f32), link_tab,
                     preferred_element_type=f32)                     # (B,128), lanes>=16 zero
    oh_gd = (iota_dir == pred + 1).astype(f32)
    demb = jnp.dot(oh_gd, demb_tab, preferred_element_type=f32)
    dh = jnp.dot(oh_gd, dh_tab, preferred_element_type=f32)

    head = link_e - dh * jnp.sum(link_e * dh, axis=1, keepdims=True) + demb
    alpha = jnp.sum(head * dh, axis=1, keepdims=True)
    # head·(t - dh(t·dh)) == (head - alpha*dh)·t  -> single push against lambda-scaled tails
    q = head - alpha * dh
    scores = jnp.dot(q, tails_lam, preferred_element_type=f32)       # (B,128), lanes>=64 zero

    # --- single lane-dense store: pred_hard in lanes 0..63, `correct` in lane 64
    out_ref[...] = scores + corr * (iota128 == CORRECT_LANE).astype(f32)


# ---------------- host-side parameter folding / packing ----------------

def _pad_to(a, shape):
    return jnp.pad(a, [(0, s - d) for d, s in zip(a.shape, shape)])


def prepare_params(p):
    """One-time fold + zero-pad of all parameters into a single (728,128) f32 slab."""
    f32 = jnp.float32
    ED, DD = EDGE_DIM, DIRECTION_DIM

    # (1) link_ED / direction_ED tables folded into fc1 -> one (224,128) operand
    blocks = []
    for t in range(OBS_LEN):
        blk = p['link_ED_emb'] @ p['fc1_w'][t * ED:(t + 1) * ED, :]
        blocks.append(_pad_to(blk, (LINK_ROWS, PAD_H)))
    for t in range(OBS_LEN):
        blk = p['direction_ED_emb'] @ p['fc1_w'][OBS_LEN * ED + t * DD:
                                                 OBS_LEN * ED + (t + 1) * DD, :]
        blocks.append(_pad_to(blk, (DIR_ROWS, PAD_H)))
    w1_fold = jnp.concatenate(blocks, axis=0)                        # (224,128)

    # (2) fc3 folded into the output layer (exact: no nonlinearity in between)
    w34 = _pad_to(p['fc3_w'] @ p['out_w'], (PAD_H, PAD_H))
    b34 = p['fc3_b'] @ p['out_w'] + p['out_b']                       # (1, DIRECTION)
    b34_pad = jnp.full((1, PAD_H), NEG_BIG, f32).at[:, :DIRECTION].set(b34)

    bias = jnp.zeros((8, PAD_H), f32)
    bias = bias.at[0:1].set(_pad_to(p['fc1_b'], (1, PAD_H)))
    bias = bias.at[1:2].set(_pad_to(p['fc2_b'], (1, PAD_H)))
    bias = bias.at[2:3].set(b34_pad)

    w2 = _pad_to(p['fc2_w'], (PAD_H, PAD_H))

    link_tab = _pad_to(p['link_emb'], (LINK_ROWS, PAD_H))
    demb_tab = _pad_to(p['direction_emb'], (DIR_ROWS, PAD_H))
    dh_tab = _pad_to(p['direction_hyper'], (DIR_ROWS, PAD_H))

    # (3) lambda_distance scaling + transpose baked into the tails operand
    tails = p['link_emb'][1:, :]                                     # (E, D)
    tails_lam = jnp.concatenate([(lam * tails).T for lam in LAMBDAS], axis=1)   # (D, pre_len*E)
    tails_lam = _pad_to(tails_lam, (TAILS_ROWS, PAD_H))

    dlab = _pad_to(p['loc_dlabels'].astype(f32), (DLAB_ROWS, PAD_H))

    slab = jnp.concatenate(
        [w1_fold, bias, w2, w34, link_tab, demb_tab, dh_tab, tails_lam, dlab], axis=0)
    assert slab.shape == (SLAB_ROWS, PAD_H)
    return slab


# ---------------- wrapper ----------------

def fused_forward(param_slab, inputs, directions, goal):
    B = inputs.shape[0]
    idx = jnp.concatenate(
        [inputs.astype(jnp.int32), directions.astype(jnp.int32),
         goal.reshape(B, 1).astype(jnp.int32)], axis=1)              # (B, 2*SEQ_LEN + 1)
    vmem = pl.BlockSpec(memory_space=pltpu.MemorySpace.VMEM)
    slab = pl.pallas_call(
        _fused_kernel,
        out_shape=jax.ShapeDtypeStruct((B, PAD_H), jnp.float32),
        in_specs=[vmem, vmem],
        out_specs=vmem,
    )(idx, param_slab)
    pred_hard = slab[:, :PRE_LEN * NUM_EDGES]
    correct = slab[0, CORRECT_LANE].astype(jnp.int32)
    return pred_hard, correct


@jax.jit
def rnn_forward(param_slab, inputs, directions, goal, rng):
    pred_hard, correct = fused_forward(param_slab, inputs, directions, goal)
    pred_d_rand = jax.random.uniform(rng, (inputs.shape[0], DIRECTION * PRE_LEN), jnp.float32)
    loss = jnp.float32(0.0)    # inference path: no training losses accumulated
    return pred_hard, pred_d_rand, loss, correct
    # TODO(synk): self.embs side attribute (only consumed by rerank()) is not materialized.


# ---------------- parameter init (deterministic, synthetic) ----------------

def init_params(key):
    ks = jax.random.split(key, 10)

    def emb(k, n, d):
        w = jax.random.normal(k, (n, d), jnp.float32) * 0.1
        return w.at[0].set(0.0)          # padding_idx=0

    def lin(k, din, dout):
        kw, kb = jax.random.split(k)
        bound = 1.0 / (din ** 0.5)
        w = jax.random.uniform(kw, (din, dout), jnp.float32, -bound, bound)
        b = jax.random.uniform(kb, (1, dout), jnp.float32, -bound, bound)
        return w, b

    p = {}
    p['link_emb'] = emb(ks[0], NUM_EDGES + 1, EDGE_DIM)
    p['direction_emb'] = emb(ks[1], DIRECTION + 1, DIRECTION_DIM)
    p['direction_hyper'] = emb(ks[2], DIRECTION + 1, DIRECTION_DIM)
    p['link_ED_emb'] = emb(ks[3], NUM_EDGES + 1, EDGE_DIM)
    p['direction_ED_emb'] = emb(ks[4], DIRECTION + 1, DIRECTION_DIM)

    in_dim = OBS_LEN * (EDGE_DIM + DIRECTION_DIM)
    p['fc1_w'], p['fc1_b'] = lin(ks[5], in_dim, HIDDEN_DIM)
    p['fc2_w'], p['fc2_b'] = lin(ks[6], HIDDEN_DIM, HIDDEN_DIM)
    p['fc3_w'], p['fc3_b'] = lin(ks[7], HIDDEN_DIM, HIDDEN_DIM)
    p['out_w'], p['out_b'] = lin(ks[8], HIDDEN_DIM, DIRECTION)

    # lambda_distance is initialised to (i+1)/pre_len exactly as in __init__; baked into tails_lam.
    p['loc_dlabels'] = jax.random.randint(
        ks[9], (NUM_EDGES, NUM_EDGES), 0, DIRECTION, dtype=jnp.int32)
    return p


# ---------------- pure-JAX reference (mirrors the PyTorch forward, inference path) ----------------

def reference_forward(params, inputs, directions, goal):
    B, S = inputs.shape
    ed_link = jnp.take(params['link_ED_emb'], inputs[:, S - OBS_LEN:], axis=0).reshape(B, -1)
    ed_dir = jnp.take(params['direction_ED_emb'], directions[:, S - OBS_LEN:], axis=0).reshape(B, -1)
    x = jnp.concatenate([ed_link, ed_dir], axis=-1)
    h = jax.nn.relu(x @ params['fc1_w'] + params['fc1_b'])
    h = jax.nn.relu(h @ params['fc2_w'] + params['fc2_b'])
    h = h @ params['fc3_w'] + params['fc3_b']
    logits = h @ params['out_w'] + params['out_b']
    last_obs = inputs[:, -1]
    label = params['loc_dlabels'][last_obs - 1, goal]
    predicted = jnp.argmax(logits, axis=1)
    correct = jnp.sum((predicted == label).astype(jnp.int32))
    link_e = jnp.take(params['link_emb'], last_obs, axis=0)
    gd = predicted + 1
    demb = jnp.take(params['direction_emb'], gd, axis=0)
    dh = jnp.take(params['direction_hyper'], gd, axis=0)
    link_proj = link_e - dh * jnp.sum(link_e * dh, axis=1, keepdims=True)
    tails = params['link_emb'][1:, :]
    tails_proj = tails[None] - dh[:, None, :] * jnp.sum(tails[None] * dh[:, None, :],
                                                        axis=-1, keepdims=True)
    head = link_proj + demb
    sims = jnp.sum(head[:, None, :] * tails_proj, axis=-1)          # (B, E)
    pred_hard = jnp.concatenate([lam * sims for lam in LAMBDAS], axis=1)
    return pred_hard, correct


if __name__ == "__main__":
    key = jax.random.PRNGKey(0)
    kp, ki, kd, kg, kr = jax.random.split(key, 5)
    params = init_params(kp)
    param_slab = prepare_params(params)

    inputs = jax.random.randint(ki, (BATCH, SEQ_LEN), 1, NUM_EDGES + 1, dtype=jnp.int32)
    directions = jax.random.randint(kd, (BATCH, SEQ_LEN), 1, DIRECTION + 1, dtype=jnp.int32)
    goal = jax.random.randint(kg, (BATCH,), 0, NUM_EDGES, dtype=jnp.int32)

    pred_hard, pred_d_rand, loss, correct = rnn_forward(param_slab, inputs, directions, goal, kr)
    jax.block_until_ready((pred_hard, pred_d_rand, loss, correct))

    assert pred_hard.shape == (BATCH, PRE_LEN * NUM_EDGES)
    assert pred_d_rand.shape == (BATCH, DIRECTION * PRE_LEN)

    ref_hard, ref_correct = reference_forward(params, inputs, directions, goal)
    np.testing.assert_allclose(np.asarray(pred_hard), np.asarray(ref_hard),
                               rtol=1e-4, atol=1e-4)
    assert int(correct) == int(ref_correct)

    print("KERNEL_OK")
</pallas_src>

<mosaic_0001>
module attributes {stable_mosaic.version = 11 : i64} {
  func.func @_fused_kernel(%arg0: memref<8x17xi32, #tpu.memory_space<vmem>>, %arg1: memref<728x128xf32, #tpu.memory_space<vmem>>, %arg2: memref<8x128xf32, #tpu.memory_space<vmem>>) attributes {dimension_semantics = [], scalar_prefetch = 0 : i64, scratch_operands = 0 : i64, tpu.core_type = #tpu.core_type<tc>} {
    %0 = tpu.iota {dimensions = array<i32: 1>} : vector<8x224xi32>
    %1 = tpu.iota {dimensions = array<i32: 1>} : vector<8x40xi32>
    %2 = tpu.iota {dimensions = array<i32: 1>} : vector<8x16xi32>
    %3 = tpu.iota {dimensions = array<i32: 1>} : vector<8x128xi32>
    %cst = arith.constant 0.000000e+00 : f32
    %4 = vector.broadcast %cst : f32 to vector<8x224xf32>
    %c0 = arith.constant 0 : index
    %c4 = arith.constant 4 : index
    %5 = vector.load %arg0[%c0, %c4] : memref<8x17xi32, #tpu.memory_space<vmem>>, vector<8x1xi32>
    %c0_i32 = arith.constant 0 : i32
    %6 = vector.broadcast %c0_i32 : i32 to vector<8x1xi32>
    %7 = arith.addi %5, %6 : vector<8x1xi32>
    %8 = vector.broadcast %7 : vector<8x1xi32> to vector<8x224xi32>
    %9 = arith.cmpi eq, %0, %8 : vector<8x224xi32>
    %10 = arith.extui %9 : vector<8x224xi1> to vector<8x224xi32>
    %11 = arith.sitofp %10 : vector<8x224xi32> to vector<8x224xf32>
    %12 = arith.addf %4, %11 : vector<8x224xf32>
    %c0_0 = arith.constant 0 : index
    %c5 = arith.constant 5 : index
    %13 = vector.load %arg0[%c0_0, %c5] : memref<8x17xi32, #tpu.memory_space<vmem>>, vector<8x1xi32>
    %c40_i32 = arith.constant 40 : i32
    %14 = vector.broadcast %c40_i32 : i32 to vector<8x1xi32>
    %15 = arith.addi %13, %14 : vector<8x1xi32>
    %16 = vector.broadcast %15 : vector<8x1xi32> to vector<8x224xi32>
    %17 = arith.cmpi eq, %0, %16 : vector<8x224xi32>
    %18 = arith.extui %17 : vector<8x224xi1> to vector<8x224xi32>
    %19 = arith.sitofp %18 : vector<8x224xi32> to vector<8x224xf32>
    %20 = arith.addf %12, %19 : vector<8x224xf32>
    %c0_1 = arith.constant 0 : index
    %c6 = arith.constant 6 : index
    %21 = vector.load %arg0[%c0_1, %c6] : memref<8x17xi32, #tpu.memory_space<vmem>>, vector<8x1xi32>
    %c80_i32 = arith.constant 80 : i32
    %22 = vector.broadcast %c80_i32 : i32 to vector<8x1xi32>
    %23 = arith.addi %21, %22 : vector<8x1xi32>
    %24 = vector.broadcast %23 : vector<8x1xi32> to vector<8x224xi32>
    %25 = arith.cmpi eq, %0, %24 : vector<8x224xi32>
    %26 = arith.extui %25 : vector<8x224xi1> to vector<8x224xi32>
    %27 = arith.sitofp %26 : vector<8x224xi32> to vector<8x224xf32>
    %28 = arith.addf %20, %27 : vector<8x224xf32>
    %c0_2 = arith.constant 0 : index
    %c7 = arith.constant 7 : index
    %29 = vector.load %arg0[%c0_2, %c7] : memref<8x17xi32, #tpu.memory_space<vmem>>, vector<8x1xi32>
    %c120_i32 = arith.constant 120 : i32
    %30 = vector.broadcast %c120_i32 : i32 to vector<8x1xi32>
    %31 = arith.addi %29, %30 : vector<8x1xi32>
    %32 = vector.broadcast %31 : vector<8x1xi32> to vector<8x224xi32>
    %33 = arith.cmpi eq, %0, %32 : vector<8x224xi32>
    %34 = arith.extui %33 : vector<8x224xi1> to vector<8x224xi32>
    %35 = arith.sitofp %34 : vector<8x224xi32> to vector<8x224xf32>
    %36 = arith.addf %28, %35 : vector<8x224xf32>
    %c0_3 = arith.constant 0 : index
    %c12 = arith.constant 12 : index
    %37 = vector.load %arg0[%c0_3, %c12] : memref<8x17xi32, #tpu.memory_space<vmem>>, vector<8x1xi32>
    %c160_i32 = arith.constant 160 : i32
    %38 = vector.broadcast %c160_i32 : i32 to vector<8x1xi32>
    %39 = arith.addi %37, %38 : vector<8x1xi32>
    %c0_i32_4 = arith.constant 0 : i32
    %40 = vector.broadcast %c0_i32_4 : i32 to vector<8x1xi32>
    %41 = arith.addi %39, %40 : vector<8x1xi32>
    %42 = vector.broadcast %41 : vector<8x1xi32> to vector<8x224xi32>
    %43 = arith.cmpi eq, %0, %42 : vector<8x224xi32>
    %44 = arith.extui %43 : vector<8x224xi1> to vector<8x224xi32>
    %45 = arith.sitofp %44 : vector<8x224xi32> to vector<8x224xf32>
    %46 = arith.addf %36, %45 : vector<8x224xf32>
    %c0_5 = arith.constant 0 : index
    %c13 = arith.constant 13 : index
    %47 = vector.load %arg0[%c0_5, %c13] : memref<8x17xi32, #tpu.memory_space<vmem>>, vector<8x1xi32>
    %c160_i32_6 = arith.constant 160 : i32
    %48 = vector.broadcast %c160_i32_6 : i32 to vector<8x1xi32>
    %49 = arith.addi %47, %48 : vector<8x1xi32>
    %c16_i32 = arith.constant 16 : i32
    %50 = vector.broadcast %c16_i32 : i32 to vector<8x1xi32>
    %51 = arith.addi %49, %50 : vector<8x1xi32>
    %52 = vector.broadcast %51 : vector<8x1xi32> to vector<8x224xi32>
    %53 = arith.cmpi eq, %0, %52 : vector<8x224xi32>
    %54 = arith.extui %53 : vector<8x224xi1> to vector<8x224xi32>
    %55 = arith.sitofp %54 : vector<8x224xi32> to vector<8x224xf32>
    %56 = arith.addf %46, %55 : vector<8x224xf32>
    %c0_7 = arith.constant 0 : index
    %c14 = arith.constant 14 : index
    %57 = vector.load %arg0[%c0_7, %c14] : memref<8x17xi32, #tpu.memory_space<vmem>>, vector<8x1xi32>
    %c160_i32_8 = arith.constant 160 : i32
    %58 = vector.broadcast %c160_i32_8 : i32 to vector<8x1xi32>
    %59 = arith.addi %57, %58 : vector<8x1xi32>
    %c32_i32 = arith.constant 32 : i32
    %60 = vector.broadcast %c32_i32 : i32 to vector<8x1xi32>
    %61 = arith.addi %59, %60 : vector<8x1xi32>
    %62 = vector.broadcast %61 : vector<8x1xi32> to vector<8x224xi32>
    %63 = arith.cmpi eq, %0, %62 : vector<8x224xi32>
    %64 = arith.extui %63 : vector<8x224xi1> to vector<8x224xi32>
    %65 = arith.sitofp %64 : vector<8x224xi32> to vector<8x224xf32>
    %66 = arith.addf %56, %65 : vector<8x224xf32>
    %c0_9 = arith.constant 0 : index
    %c15 = arith.constant 15 : index
    %67 = vector.load %arg0[%c0_9, %c15] : memref<8x17xi32, #tpu.memory_space<vmem>>, vector<8x1xi32>
    %c160_i32_10 = arith.constant 160 : i32
    %68 = vector.broadcast %c160_i32_10 : i32 to vector<8x1xi32>
    %69 = arith.addi %67, %68 : vector<8x1xi32>
    %c48_i32 = arith.constant 48 : i32
    %70 = vector.broadcast %c48_i32 : i32 to vector<8x1xi32>
    %71 = arith.addi %69, %70 : vector<8x1xi32>
    %72 = vector.broadcast %71 : vector<8x1xi32> to vector<8x224xi32>
    %73 = arith.cmpi eq, %0, %72 : vector<8x224xi32>
    %74 = arith.extui %73 : vector<8x224xi1> to vector<8x224xi32>
    %75 = arith.sitofp %74 : vector<8x224xi32> to vector<8x224xf32>
    %76 = arith.addf %66, %75 : vector<8x224xf32>
    %c0_11 = arith.constant 0 : index
    %c0_12 = arith.constant 0 : index
    %77 = vector.load %arg1[%c0_11, %c0_12] : memref<728x128xf32, #tpu.memory_space<vmem>>, vector<224x128xf32>
    %c224 = arith.constant 224 : index
    %c0_13 = arith.constant 0 : index
    %78 = vector.load %arg1[%c224, %c0_13] : memref<728x128xf32, #tpu.memory_space<vmem>>, vector<1x128xf32>
    %c225 = arith.constant 225 : index
    %c0_14 = arith.constant 0 : index
    %79 = vector.load %arg1[%c225, %c0_14] : memref<728x128xf32, #tpu.memory_space<vmem>>, vector<1x128xf32>
    %c226 = arith.constant 226 : index
    %c0_15 = arith.constant 0 : index
    %80 = vector.load %arg1[%c226, %c0_15] : memref<728x128xf32, #tpu.memory_space<vmem>>, vector<1x128xf32>
    %c232 = arith.constant 232 : index
    %c0_16 = arith.constant 0 : index
    %81 = vector.load %arg1[%c232, %c0_16] : memref<728x128xf32, #tpu.memory_space<vmem>>, vector<128x128xf32>
    %c360 = arith.constant 360 : index
    %c0_17 = arith.constant 0 : index
    %82 = vector.load %arg1[%c360, %c0_17] : memref<728x128xf32, #tpu.memory_space<vmem>>, vector<128x128xf32>
    %cst_18 = arith.constant dense<0.000000e+00> : vector<8x128xf32>
    %83 = tpu.matmul %76, %77, %cst_18 {dimension_numbers = #tpu.dot_dimension_numbers<[1], [0], [0], [1], [0, 0, 1, 1], [], []>} : vector<8x224xf32>, vector<224x128xf32>, vector<8x128xf32> -> vector<8x128xf32>
    %84 = vector.broadcast %78 : vector<1x128xf32> to vector<8x128xf32>
    %85 = arith.addf %83, %84 : vector<8x128xf32>
    %cst_19 = arith.constant 0.000000e+00 : f32
    %86 = vector.broadcast %cst_19 : f32 to vector<8x128xf32>
    %87 = arith.maximumf %85, %86 : vector<8x128xf32>
    %cst_20 = arith.constant dense<0.000000e+00> : vector<8x128xf32>
    %88 = tpu.matmul %87, %81, %cst_20 {dimension_numbers = #tpu.dot_dimension_numbers<[1], [0], [0], [1], [0, 0, 1, 1], [], []>} : vector<8x128xf32>, vector<128x128xf32>, vector<8x128xf32> -> vector<8x128xf32>
    %89 = vector.broadcast %79 : vector<1x128xf32> to vector<8x128xf32>
    %90 = arith.addf %88, %89 : vector<8x128xf32>
    %cst_21 = arith.constant 0.000000e+00 : f32
    %91 = vector.broadcast %cst_21 : f32 to vector<8x128xf32>
    %92 = arith.maximumf %90, %91 : vector<8x128xf32>
    %cst_22 = arith.constant dense<0.000000e+00> : vector<8x128xf32>
    %93 = tpu.matmul %92, %82, %cst_22 {dimension_numbers = #tpu.dot_dimension_numbers<[1], [0], [0], [1], [0, 0, 1, 1], [], []>} : vector<8x128xf32>, vector<128x128xf32>, vector<8x128xf32> -> vector<8x128xf32>
    %94 = vector.broadcast %80 : vector<1x128xf32> to vector<8x128xf32>
    %95 = arith.addf %93, %94 : vector<8x128xf32>
    %cst_23 = arith.constant dense<0xFF800000> : vector<8xf32>
    %96 = vector.multi_reduction <maximumf>, %95, %cst_23 [1] : vector<8x128xf32> to vector<8xf32>
    %97 = vector.shape_cast %96 : vector<8xf32> to vector<8x1xf32>
    %98 = arith.sitofp %3 : vector<8x128xi32> to vector<8x128xf32>
    %99 = vector.broadcast %97 : vector<8x1xf32> to vector<8x128xf32>
    %100 = arith.cmpf oeq, %95, %99 : vector<8x128xf32>
    %cst_24 = arith.constant 1.280000e+02 : f32
    %101 = vector.broadcast %cst_24 : f32 to vector<8x128xf32>
    %102 = arith.select %100, %98, %101 : vector<8x128xi1>, vector<8x128xf32>
    %cst_25 = arith.constant dense<0x7F800000> : vector<8xf32>
    %103 = vector.multi_reduction <minimumf>, %102, %cst_25 [1] : vector<8x128xf32> to vector<8xf32>
    %104 = vector.shape_cast %103 : vector<8xf32> to vector<8x1xf32>
    %105 = arith.fptosi %104 : vector<8x1xf32> to vector<8x1xi32>
    %c0_26 = arith.constant 0 : index
    %c7_27 = arith.constant 7 : index
    %106 = vector.load %arg0[%c0_26, %c7_27] : memref<8x17xi32, #tpu.memory_space<vmem>>, vector<8x1xi32>
    %c0_28 = arith.constant 0 : index
    %c16 = arith.constant 16 : index
    %107 = vector.load %arg0[%c0_28, %c16] : memref<8x17xi32, #tpu.memory_space<vmem>>, vector<8x1xi32>
    %c688 = arith.constant 688 : index
    %c0_29 = arith.constant 0 : index
    %108 = vector.load %arg1[%c688, %c0_29] : memref<728x128xf32, #tpu.memory_space<vmem>>, vector<40x128xf32>
    %c1_i32 = arith.constant 1 : i32
    %109 = vector.broadcast %c1_i32 : i32 to vector<8x1xi32>
    %110 = arith.subi %106, %109 : vector<8x1xi32>
    %111 = vector.broadcast %110 : vector<8x1xi32> to vector<8x40xi32>
    %112 = arith.cmpi eq, %1, %111 : vector<8x40xi32>
    %113 = arith.extui %112 : vector<8x40xi1> to vector<8x40xi32>
    %114 = arith.sitofp %113 : vector<8x40xi32> to vector<8x40xf32>
    %cst_30 = arith.constant dense<0.000000e+00> : vector<8x128xf32>
    %115 = tpu.matmul %114, %108, %cst_30 {dimension_numbers = #tpu.dot_dimension_numbers<[1], [0], [0], [1], [0, 0, 1, 1], [], []>} : vector<8x40xf32>, vector<40x128xf32>, vector<8x128xf32> -> vector<8x128xf32>
    %116 = vector.broadcast %107 : vector<8x1xi32> to vector<8x128xi32>
    %117 = arith.cmpi eq, %3, %116 : vector<8x128xi32>
    %118 = arith.extui %117 : vector<8x128xi1> to vector<8x128xi32>
    %119 = arith.sitofp %118 : vector<8x128xi32> to vector<8x128xf32>
    %120 = arith.mulf %115, %119 : vector<8x128xf32>
    %cst_31 = arith.constant dense<0.000000e+00> : vector<8xf32>
    %121 = vector.multi_reduction <add>, %120, %cst_31 [1] : vector<8x128xf32> to vector<8xf32>
    %122 = vector.shape_cast %121 : vector<8xf32> to vector<8x1xf32>
    %123 = arith.cmpf oeq, %104, %122 : vector<8x1xf32>
    %124 = arith.extui %123 : vector<8x1xi1> to vector<8x1xi32>
    %125 = arith.sitofp %124 : vector<8x1xi32> to vector<8x1xf32>
    %126 = vector.shape_cast %125 : vector<8x1xf32> to vector<1x8x1xf32>
    %cst_32 = arith.constant dense<0.000000e+00> : vector<1xf32>
    %127 = vector.multi_reduction <add>, %126, %cst_32 [1, 2] : vector<1x8x1xf32> to vector<1xf32>
    %128 = vector.shape_cast %127 : vector<1xf32> to vector<1x1x1xf32>
    %129 = vector.extract %128[0, 0, 0] : f32 from vector<1x1x1xf32>
    %c488 = arith.constant 488 : index
    %c0_33 = arith.constant 0 : index
    %130 = vector.load %arg1[%c488, %c0_33] : memref<728x128xf32, #tpu.memory_space<vmem>>, vector<40x128xf32>
    %c528 = arith.constant 528 : index
    %c0_34 = arith.constant 0 : index
    %131 = vector.load %arg1[%c528, %c0_34] : memref<728x128xf32, #tpu.memory_space<vmem>>, vector<16x128xf32>
    %c544 = arith.constant 544 : index
    %c0_35 = arith.constant 0 : index
    %132 = vector.load %arg1[%c544, %c0_35] : memref<728x128xf32, #tpu.memory_space<vmem>>, vector<16x128xf32>
    %c560 = arith.constant 560 : index
    %c0_36 = arith.constant 0 : index
    %133 = vector.load %arg1[%c560, %c0_36] : memref<728x128xf32, #tpu.memory_space<vmem>>, vector<128x128xf32>
    %134 = vector.broadcast %106 : vector<8x1xi32> to vector<8x40xi32>
    %135 = arith.cmpi eq, %1, %134 : vector<8x40xi32>
    %136 = arith.extui %135 : vector<8x40xi1> to vector<8x40xi32>
    %137 = arith.sitofp %136 : vector<8x40xi32> to vector<8x40xf32>
    %cst_37 = arith.constant dense<0.000000e+00> : vector<8x128xf32>
    %138 = tpu.matmul %137, %130, %cst_37 {dimension_numbers = #tpu.dot_dimension_numbers<[1], [0], [0], [1], [0, 0, 1, 1], [], []>} : vector<8x40xf32>, vector<40x128xf32>, vector<8x128xf32> -> vector<8x128xf32>
    %c1_i32_38 = arith.constant 1 : i32
    %139 = vector.broadcast %c1_i32_38 : i32 to vector<8x1xi32>
    %140 = arith.addi %105, %139 : vector<8x1xi32>
    %141 = vector.broadcast %140 : vector<8x1xi32> to vector<8x16xi32>
    %142 = arith.cmpi eq, %2, %141 : vector<8x16xi32>
    %143 = arith.extui %142 : vector<8x16xi1> to vector<8x16xi32>
    %144 = arith.sitofp %143 : vector<8x16xi32> to vector<8x16xf32>
    %cst_39 = arith.constant dense<0.000000e+00> : vector<8x128xf32>
    %145 = tpu.matmul %144, %131, %cst_39 {dimension_numbers = #tpu.dot_dimension_numbers<[1], [0], [0], [1], [0, 0, 1, 1], [], []>} : vector<8x16xf32>, vector<16x128xf32>, vector<8x128xf32> -> vector<8x128xf32>
    %cst_40 = arith.constant dense<0.000000e+00> : vector<8x128xf32>
    %146 = tpu.matmul %144, %132, %cst_40 {dimension_numbers = #tpu.dot_dimension_numbers<[1], [0], [0], [1], [0, 0, 1, 1], [], []>} : vector<8x16xf32>, vector<16x128xf32>, vector<8x128xf32> -> vector<8x128xf32>
    %147 = arith.mulf %138, %146 : vector<8x128xf32>
    %cst_41 = arith.constant dense<0.000000e+00> : vector<8xf32>
    %148 = vector.multi_reduction <add>, %147, %cst_41 [1] : vector<8x128xf32> to vector<8xf32>
    %149 = vector.shape_cast %148 : vector<8xf32> to vector<8x1xf32>
    %150 = vector.broadcast %149 : vector<8x1xf32> to vector<8x128xf32>
    %151 = arith.mulf %146, %150 : vector<8x128xf32>
    %152 = arith.subf %138, %151 : vector<8x128xf32>
    %153 = arith.addf %152, %145 : vector<8x128xf32>
    %154 = arith.mulf %153, %146 : vector<8x128xf32>
    %cst_42 = arith.constant dense<0.000000e+00> : vector<8xf32>
    %155 = vector.multi_reduction <add>, %154, %cst_42 [1] : vector<8x128xf32> to vector<8xf32>
    %156 = vector.shape_cast %155 : vector<8xf32> to vector<8x1xf32>
    %157 = vector.broadcast %156 : vector<8x1xf32> to vector<8x128xf32>
    %158 = arith.mulf %157, %146 : vector<8x128xf32>
    %159 = arith.subf %153, %158 : vector<8x128xf32>
    %cst_43 = arith.constant dense<0.000000e+00> : vector<8x128xf32>
    %160 = tpu.matmul %159, %133, %cst_43 {dimension_numbers = #tpu.dot_dimension_numbers<[1], [0], [0], [1], [0, 0, 1, 1], [], []>} : vector<8x128xf32>, vector<128x128xf32>, vector<8x128xf32> -> vector<8x128xf32>
    %c64_i32 = arith.constant 64 : i32
    %161 = vector.broadcast %c64_i32 : i32 to vector<8x128xi32>
    %162 = arith.cmpi eq, %3, %161 : vector<8x128xi32>
    %163 = arith.extui %162 : vector<8x128xi1> to vector<8x128xi32>
    %164 = arith.sitofp %163 : vector<8x128xi32> to vector<8x128xf32>
    %165 = vector.broadcast %129 : f32 to vector<8x128xf32>
    %166 = arith.mulf %165, %164 : vector<8x128xf32>
    %167 = arith.addf %160, %166 : vector<8x128xf32>
    %c0_44 = arith.constant 0 : index
    %c0_45 = arith.constant 0 : index
    %168 = vector.load %arg2[%c0_44, %c0_45] : memref<8x128xf32, #tpu.memory_space<vmem>>, vector<8x128xf32>
    tpu.vector_store %arg2[%c0_44, %c0_45], %167 {strides = array<i32>} : memref<8x128xf32, #tpu.memory_space<vmem>>, vector<8x128xf32>,
    return
  }
}

</mosaic_0001>

<llo_original>
// kernel: rnn_forward.1
$region0: #{rnn_forward.1}
  #allocation0 [shape = 'u32[]', space=smem, size = 0x4, offset = 0x4, fixed_abs, tag = 'smem constant byte address 0x4 - core index']
  #allocation1 [shape = 'u32[72,128]{1,0:T(1,128)}', space=vmem, size = 0x9000, scoped, tag = 'internal scratch']
  %s0 = inlined_call_operand.vmem [shape: s32[8,17], index: 0, kind: input, shape index: {}]
  %s1 = inlined_call_operand.hbm [shape: f32[728,128], index: 1, kind: input, shape index: {}]
  %s2 = inlined_call_operand.vmem [shape: f32[8,128], index: 2, kind: output, shape index: {}]
  %s3 = sld [smem:[#allocation0]]
  $region22: #{rnn_forward.1} parent=0
    _
  %s5 = ssub.s32 1, %s3
  %s6 = scalar_select 0, %s5, %s3
  $region1: #{rnn_forward.1} parent=0
    #allocation2 [shape = 'u8[372736]{0}', space=vmem, size = 0x5b000, scoped, tag = 'input window, operand 1, single buffered']
    #allocation3 [shape = 's32[1]{0}', space=sflag, size = 0x4, scoped, tag = 'scoped memory for rnn_forward.1']
    %7 = vsyncpa [#allocation3], 0
    // Predicated region
    $region2: #{rnn_forward.1} parent=1 // pred_check
      _
    $region3: #{rnn_forward.1} parent=1 // pred_check_branch
      %9 = sbr.rel (0) target = $region5
    $region4: #{rnn_forward.1} parent=1 // pred_region
      _
    $region5: #{rnn_forward.1} parent=1 // pred_fallthru
      _
    // Predicated region
    $region6: #{rnn_forward.1} parent=1 // pred_check
      _
    $region7: #{rnn_forward.1} parent=1 // pred_check_branch
      %11 = sbr.rel (0) target = $region9
    $region8: #{rnn_forward.1} parent=1 // pred_region
      %13 = vsyncadd [#allocation3], 0
      %s14 = sshll.u32 %s1, 4
      %s15 = int_to_ptr.hbm [resolvable:$true] %s14
      %s16 = sshll.u32 [#allocation2], 4
      %s17 = int_to_ptr.vmem [resolvable:$true] %s16
      %22 = dma.hbm_to_vmem [thread:$0]  %s15, 11648, %s17, [#allocation3], 128, 128, 8
    $region9: #{rnn_forward.1} parent=1 // pred_fallthru
      _
    // Predicated region
    $region10: #{rnn_forward.1} parent=1 // pred_check
      _
    $region11: #{rnn_forward.1} parent=1 // pred_check_branch
      %24 = sbr.rel (0) target = $region13
    $region12: #{rnn_forward.1} parent=1 // pred_region
      %26 = dma.done [#allocation3], 11648
    $region13: #{rnn_forward.1} parent=1 // pred_fallthru
      _
    %v27 = vlaneseq
    %v28 = vand.u32 %v27, 127
    %v29 = vadd.s32 %v28, 128
    %v30 = vld [vmem:[%s0] sm:$0xff]
    %31 = vset.pattern.permute.xlu0 4
    %32 = vperm.xlu0 %31, %v30
    %v33 = vpop.permute.xlu0 %32
    %vm34 = vcmp.eq.s32.totalorder %v28, %v33
    %vm35 = vcmp.eq.s32.totalorder %v29, %v33
    %v36 = vsel %vm34, 1, 0
    %v37 = vsel %vm35, 1, 0
    %v38 = vcvt.s32.f32 %v36
    %v39 = vcvt.s32.f32 %v37
    %v40 = vadd.f32 %v38, 0.0
    %v41 = vadd.f32 %v39, 0.0
    %v42 = vadd.s32 %v30, 40
    %43 = vset.pattern.permute.xlu0 5
    %44 = vperm.xlu0 %43, %v42
    %v45 = vpop.permute.xlu0 %44
    %vm46 = vcmp.eq.s32.totalorder %v28, %v45
    %vm47 = vcmp.eq.s32.totalorder %v29, %v45
    %v48 = vsel %vm46, 1, 0
    %v49 = vsel %vm47, 1, 0
    %v50 = vcvt.s32.f32 %v48
    %v51 = vcvt.s32.f32 %v49
    %v52 = vadd.f32 %v40, %v50
    %v53 = vadd.f32 %v41, %v51
    %v54 = vadd.s32 %v30, 80
    %55 = vset.pattern.permute.xlu0 6
    %56 = vperm.xlu0 %55, %v54
    %v57 = vpop.permute.xlu0 %56
    %vm58 = vcmp.eq.s32.totalorder %v28, %v57
    %vm59 = vcmp.eq.s32.totalorder %v29, %v57
    %v60 = vsel %vm58, 1, 0
    %v61 = vsel %vm59, 1, 0
    %v62 = vcvt.s32.f32 %v60
    %v63 = vcvt.s32.f32 %v61
    %v64 = vadd.f32 %v52, %v62
    %v65 = vadd.f32 %v53, %v63
    %v66 = vadd.s32 %v30, 120
    %67 = vset.pattern.permute.xlu0 7
    %68 = vperm.xlu0 %67, %v66
    %v69 = vpop.permute.xlu0 %68
    %vm70 = vcmp.eq.s32.totalorder %v28, %v69
    %vm71 = vcmp.eq.s32.totalorder %v29, %v69
    %v72 = vsel %vm70, 1, 0
    %v73 = vsel %vm71, 1, 0
    %v74 = vcvt.s32.f32 %v72
    %v75 = vcvt.s32.f32 %v73
    %v76 = vadd.f32 %v64, %v74
    %v77 = vadd.f32 %v65, %v75
    %v78 = vadd.s32 %v30, 160
    %79 = vset.pattern.permute.xlu0 12
    %80 = vperm.xlu0 %79, %v78
    %v81 = vpop.permute.xlu0 %80
    %vm82 = vcmp.eq.s32.totalorder %v28, %v81
    %vm83 = vcmp.eq.s32.totalorder %v29, %v81
    %v84 = vsel %vm82, 1, 0
    %v85 = vsel %vm83, 1, 0
    %v86 = vcvt.s32.f32 %v84
    %v87 = vcvt.s32.f32 %v85
    %v88 = vadd.f32 %v76, %v86
    %v89 = vadd.f32 %v77, %v87
    %v90 = vadd.s32 %v78, 16
    %91 = vset.pattern.permute.xlu0 13
    %92 = vperm.xlu0 %91, %v90
    %v93 = vpop.permute.xlu0 %92
    %vm94 = vcmp.eq.s32.totalorder %v28, %v93
    %vm95 = vcmp.eq.s32.totalorder %v29, %v93
    %v96 = vsel %vm94, 1, 0
    %v97 = vsel %vm95, 1, 0
    %v98 = vcvt.s32.f32 %v96
    %v99 = vcvt.s32.f32 %v97
    %v100 = vadd.f32 %v88, %v98
    %v101 = vadd.f32 %v89, %v99
    %v102 = vadd.s32 %v78, 32
    %103 = vset.pattern.permute.xlu0 14
    %104 = vperm.xlu0 %103, %v102
    %v105 = vpop.permute.xlu0 %104
    %vm106 = vcmp.eq.s32.totalorder %v28, %v105
    %vm107 = vcmp.eq.s32.totalorder %v29, %v105
    %v108 = vsel %vm106, 1, 0
    %v109 = vsel %vm107, 1, 0
    %v110 = vcvt.s32.f32 %v108
    %v111 = vcvt.s32.f32 %v109
    %v112 = vadd.f32 %v100, %v110
    %v113 = vadd.f32 %v101, %v111
    %v114 = vadd.s32 %v78, 48
    %115 = vset.pattern.permute.xlu0 15
    %116 = vperm.xlu0 %115, %v114
    %v117 = vpop.permute.xlu0 %116
    %vm118 = vcmp.eq.s32.totalorder %v28, %v117
    %vm119 = vcmp.eq.s32.totalorder %v29, %v117
    %v120 = vsel %vm118, 1, 0
    %v121 = vsel %vm119, 1, 0
    %v122 = vcvt.s32.f32 %v120
    %v123 = vcvt.s32.f32 %v121
    %v124 = vadd.f32 %v112, %v122
    %v125 = vadd.f32 %v113, %v123
    %v126 = vld [vmem:[#allocation2] sm:$0xff]
    %v127 = vld [vmem:[#allocation2 + $0x8] sm:$0xff]
    %v128 = vld [vmem:[#allocation2 + $0x10] sm:$0xff]
    %v129 = vld [vmem:[#allocation2 + $0x18] sm:$0xff]
    %v130 = vld [vmem:[#allocation2 + $0x20] sm:$0xff]
    %v131 = vld [vmem:[#allocation2 + $0x28] sm:$0xff]
    %v132 = vld [vmem:[#allocation2 + $0x30] sm:$0xff]
    %v133 = vld [vmem:[#allocation2 + $0x38] sm:$0xff]
    %v134 = vld [vmem:[#allocation2 + $0x40] sm:$0xff]
    %v135 = vld [vmem:[#allocation2 + $0x48] sm:$0xff]
    %v136 = vld [vmem:[#allocation2 + $0x50] sm:$0xff]
    %v137 = vld [vmem:[#allocation2 + $0x58] sm:$0xff]
    %v138 = vld [vmem:[#allocation2 + $0x60] sm:$0xff]
    %v139 = vld [vmem:[#allocation2 + $0x68] sm:$0xff]
    %v140 = vld [vmem:[#allocation2 + $0x70] sm:$0xff]
    %v141 = vld [vmem:[#allocation2 + $0x78] sm:$0xff]
    %v142 = vld [vmem:[#allocation2 + $0x80] sm:$0xff]
    %v143 = vld [vmem:[#allocation2 + $0x88] sm:$0xff]
    %v144 = vld [vmem:[#allocation2 + $0x90] sm:$0xff]
    %v145 = vld [vmem:[#allocation2 + $0x98] sm:$0xff]
    %v146 = vld [vmem:[#allocation2 + $0xa0] sm:$0xff]
    %v147 = vld [vmem:[#allocation2 + $0xa8] sm:$0xff]
    %v148 = vld [vmem:[#allocation2 + $0xb0] sm:$0xff]
    %v149 = vld [vmem:[#allocation2 + $0xb8] sm:$0xff]
    %v150 = vld [vmem:[#allocation2 + $0xc0] sm:$0xff]
    %v151 = vld [vmem:[#allocation2 + $0xc8] sm:$0xff]
    %v152 = vld [vmem:[#allocation2 + $0xd0] sm:$0xff]
    %v153 = vld [vmem:[#allocation2 + $0xd8] sm:$0xff]
    %v154 = vld [vmem:[#allocation2 + $0xe0] sm:$0x1]
    %v155 = vld [vmem:[#allocation2 + $0xe1] sm:$0x1]
    %v156 = vld [vmem:[#allocation2 + $0xe2] sm:$0x1]
    %v157 = vld [vmem:[#allocation2 + $0xe8] sm:$0xff]
    %v158 = vld [vmem:[#allocation2 + $0xf0] sm:$0xff]
    %v159 = vld [vmem:[#allocation2 + $0xf8] sm:$0xff]
    %v160 = vld [vmem:[#allocation2 + $0x100] sm:$0xff]
    %v161 = vld [vmem:[#allocation2 + $0x108] sm:$0xff]
    %v162 = vld [vmem:[#allocation2 + $0x110] sm:$0xff]
    %v163 = vld [vmem:[#allocation2 + $0x118] sm:$0xff]
    %v164 = vld [vmem:[#allocation2 + $0x120] sm:$0xff]
    %v165 = vld [vmem:[#allocation2 + $0x128] sm:$0xff]
    %v166 = vld [vmem:[#allocation2 + $0x130] sm:$0xff]
    %v167 = vld [vmem:[#allocation2 + $0x138] sm:$0xff]
    %v168 = vld [vmem:[#allocation2 + $0x140] sm:$0xff]
    %v169 = vld [vmem:[#allocation2 + $0x148] sm:$0xff]
    %v170 = vld [vmem:[#allocation2 + $0x150] sm:$0xff]
    %v171 = vld [vmem:[#allocation2 + $0x158] sm:$0xff]
    %v172 = vld [vmem:[#allocation2 + $0x160] sm:$0xff]
    %v173 = vld [vmem:[#allocation2 + $0x168] sm:$0xff]
    %v174 = vld [vmem:[#allocation2 + $0x170] sm:$0xff]
    %v175 = vld [vmem:[#allocation2 + $0x178] sm:$0xff]
    %v176 = vld [vmem:[#allocation2 + $0x180] sm:$0xff]
    %v177 = vld [vmem:[#allocation2 + $0x188] sm:$0xff]
    %v178 = vld [vmem:[#allocation2 + $0x190] sm:$0xff]
    %v179 = vld [vmem:[#allocation2 + $0x198] sm:$0xff]
    %v180 = vld [vmem:[#allocation2 + $0x1a0] sm:$0xff]
    %v181 = vld [vmem:[#allocation2 + $0x1a8] sm:$0xff]
    %v182 = vld [vmem:[#allocation2 + $0x1b0] sm:$0xff]
    %v183 = vld [vmem:[#allocation2 + $0x1b8] sm:$0xff]
    %v184 = vld [vmem:[#allocation2 + $0x1c0] sm:$0xff]
    %v185 = vld [vmem:[#allocation2 + $0x1c8] sm:$0xff]
    %v186 = vld [vmem:[#allocation2 + $0x1d0] sm:$0xff]
    %v187 = vld [vmem:[#allocation2 + $0x1d8] sm:$0xff]
    %v188 = vld [vmem:[#allocation2 + $0x1e0] sm:$0xff]
    %v189 = vperm.slane %v154, 0
    %vm190 = vcmask 785408
    %v192 = vsel %vm190, %v125, 0
    %194 = vmatpush.msra.mxu0 %v141
    %195 = vmatpush.msra.mxu0 %v140
    %196 = vmatpush.msra.mxu0 %v139
    %197 = vmatpush.msra.mxu0 %v138
    %198 = vmatpush.msra.mxu0 %v137
    %199 = vmatpush.msra.mxu0 %v136
    %200 = vmatpush.msra.mxu0 %v135
    %201 = vmatpush.msra.mxu0 %v134
    %202 = vmatpush.msra.mxu0 %v133
    %203 = vmatpush.msra.mxu0 %v132
    %204 = vmatpush.msra.mxu0 %v131
    %205 = vmatpush.msra.mxu0 %v130
    %206 = vmatpush.msra.mxu0 %v129
    %207 = vmatpush.msra.mxu0 %v128
    %208 = vmatpush.msra.mxu0 %v127
    %209 = vmatpush.msra.mxu0 %v126
    %210 = vmatmul.f32.gmra.mxu0 %v124
    %v211 = vpop.f32.mrf.mxu0
    %v212 = vadd.f32 %v189, %v211
    %213 = vdwg.mxu0
    %214 = vmatpush.msra.mxu0 0.0
    %215 = vmatpush.msra.mxu0 0.0
    %216 = vmatpush.msra.mxu0 0.0
    %217 = vmatpush.msra.mxu0 0.0
    %218 = vmatpush.msra.mxu0 %v153
    %219 = vmatpush.msra.mxu0 %v152
    %220 = vmatpush.msra.mxu0 %v151
    %221 = vmatpush.msra.mxu0 %v150
    %222 = vmatpush.msra.mxu0 %v149
    %223 = vmatpush.msra.mxu0 %v148
    %224 = vmatpush.msra.mxu0 %v147
    %225 = vmatpush.msra.mxu0 %v146
    %226 = vmatpush.msra.mxu0 %v145
    %227 = vmatpush.msra.mxu0 %v144
    %228 = vmatpush.msra.mxu0 %v143
    %229 = vmatpush.msra.mxu0 %v142
    %230 = vmatmul.f32.gmra.mxu0 %v192
    %v231 = vpop.f32.mrf.mxu0
    %v232 = vadd.f32 %v212, %v231
    %233 = vdwg.mxu0
    %v234 = vmax.f32 %v232, 0.0
    %v235 = vperm.slane %v155, 0
    %236 = vmatpush.msra.mxu0 %v172
    %237 = vmatpush.msra.mxu0 %v171
    %238 = vmatpush.msra.mxu0 %v170
    %239 = vmatpush.msra.mxu0 %v169
    %240 = vmatpush.msra.mxu0 %v168
    %241 = vmatpush.msra.mxu0 %v167
    %242 = vmatpush.msra.mxu0 %v166
    %243 = vmatpush.msra.mxu0 %v165
    %244 = vmatpush.msra.mxu0 %v164
    %245 = vmatpush.msra.mxu0 %v163
    %246 = vmatpush.msra.mxu0 %v162
    %247 = vmatpush.msra.mxu0 %v161
    %248 = vmatpush.msra.mxu0 %v160
    %249 = vmatpush.msra.mxu0 %v159
    %250 = vmatpush.msra.mxu0 %v158
    %251 = vmatpush.msra.mxu0 %v157
    %252 = vmatmul.f32.gmra.mxu0 %v234
    %v253 = vpop.f32.mrf.mxu0
    %v254 = vadd.f32 %v235, %v253
    %255 = vdwg.mxu0
    %v256 = vmax.f32 %v254, 0.0
    %v257 = vperm.slane %v156, 0
    %258 = vmatpush.msra.mxu0 %v188
    %259 = vmatpush.msra.mxu0 %v187
    %260 = vmatpush.msra.mxu0 %v186
    %261 = vmatpush.msra.mxu0 %v185
    %262 = vmatpush.msra.mxu0 %v184
    %263 = vmatpush.msra.mxu0 %v183
    %264 = vmatpush.msra.mxu0 %v182
    %265 = vmatpush.msra.mxu0 %v181
    %266 = vmatpush.msra.mxu0 %v180
    %267 = vmatpush.msra.mxu0 %v179
    %268 = vmatpush.msra.mxu0 %v178
    %269 = vmatpush.msra.mxu0 %v177
    %270 = vmatpush.msra.mxu0 %v176
    %271 = vmatpush.msra.mxu0 %v175
    %272 = vmatpush.msra.mxu0 %v174
    %273 = vmatpush.msra.mxu0 %v173
    %274 = vmatmul.f32.gmra.mxu0 %v256
    %v275 = vpop.f32.mrf.mxu0
    %v276 = vadd.f32 %v257, %v275
    %277 = vdwg.mxu0
    %278 = vmax.xlane.f32.xlu0 %v276
    %v279 = vpop.xlane.xlu0 %278
    %v280 = vcvt.s32.f32 %v28
    %vm281 = vcmp.eq.f32.partialorder %v276, %v279
    %v282 = vsel %vm281, %v280, 128.0
    %283 = vmin.xlane.f32.xlu0 %v282
    %v284 = vpop.xlane.xlu0 %283
    %v285 = vcvt.f32.s32.to.zero.pseudo %v284
    %v286 = vld [vmem:[#allocation2 + $0x2b0] sm:$0xff]
    %v287 = vld [vmem:[#allocation2 + $0x2b8] sm:$0xff]
    %v288 = vld [vmem:[#allocation2 + $0x2c0] sm:$0xff]
    %v289 = vld [vmem:[#allocation2 + $0x2c8] sm:$0xff]
    %v290 = vld [vmem:[#allocation2 + $0x2d0] sm:$0xff]
    %v291 = vsub.s32 %v30, 1
    %292 = vset.pattern.permute.xlu0 7
    %293 = vperm.xlu0 %292, %v291
    %v294 = vpop.permute.xlu0 %293
    %vm295 = vcmp.eq.s32.totalorder %v28, %v294
    %v296 = vsel %vm295, 1, 0
    %v297 = vcvt.s32.f32 %v296
    %vm298 = vcmask 326656
    %v300 = vsel %vm298, %v297, 0
    %302 = vmatpush.msra.mxu0 0.0
    %303 = vmatpush.msra.mxu0 0.0
    %304 = vmatpush.msra.mxu0 0.0
    %305 = vmatpush.msra.mxu0 0.0
    %306 = vmatpush.msra.mxu0 0.0
    %307 = vmatpush.msra.mxu0 0.0
    %308 = vmatpush.msra.mxu0 0.0
    %309 = vmatpush.msra.mxu0 0.0
    %310 = vmatpush.msra.mxu0 0.0
    %311 = vmatpush.msra.mxu0 0.0
    %312 = vmatpush.msra.mxu0 0.0
    %313 = vmatpush.msra.mxu0 %v290
    %314 = vmatpush.msra.mxu0 %v289
    %315 = vmatpush.msra.mxu0 %v288
    %316 = vmatpush.msra.mxu0 %v287
    %317 = vmatpush.msra.mxu0 %v286
    %318 = vmatmul.f32.gmra.mxu0 %v300
    %v319 = vpop.f32.mrf.mxu0
    %v320 = vadd.f32 0.0, %v319
    %321 = vdwg.mxu0
    %322 = vset.pattern.permute.xlu0 16
    %323 = vperm.xlu0 %322, %v30
    %v324 = vpop.permute.xlu0 %323
    %vm325 = vcmp.eq.s32.totalorder %v28, %v324
    %v326 = vsel %vm325, 1, 0
    %v327 = vcvt.s32.f32 %v326
    %v328 = vmul.f32 %v320, %v327
    %329 = vadd.xlane.f32.xlu0 %v328
    %v330 = vpop.xlane.xlu0 %329
    %vm331 = vcmp.eq.f32.partialorder %v284, %v330
    %v332 = vsel %vm331, 1, 0
    %v333 = vcvt.s32.f32 %v332
    %vm334 = vcmask 7168
    %v335 = vsel %vm334, %v333, 0.0
    %336 = vadd.xlane.f32.xlu0 %v335
    %v337 = vpop.xlane.xlu0 %336
    %v338 = vrot.slane %v337, 4
    %v339 = vadd.f32 %v337, %v338
    %v340 = vrot.slane %v339, 2
    %v341 = vadd.f32 %v339, %v340
    %v342 = vrot.slane %v341, 1
    %v343 = vadd.f32 %v341, %v342
    %s344 = vtos %v343
    %v345 = vld [vmem:[#allocation2 + $0x1e8] sm:$0xff]
    %v346 = vld [vmem:[#allocation2 + $0x1f0] sm:$0xff]
    %v347 = vld [vmem:[#allocation2 + $0x1f8] sm:$0xff]
    %v348 = vld [vmem:[#allocation2 + $0x200] sm:$0xff]
    %v349 = vld [vmem:[#allocation2 + $0x208] sm:$0xff]
    %v350 = vld [vmem:[#allocation2 + $0x210] sm:$0xff]
    %v351 = vld [vmem:[#allocation2 + $0x218] sm:$0xff]
    %v352 = vld [vmem:[#allocation2 + $0x220] sm:$0xff]
    %v353 = vld [vmem:[#allocation2 + $0x228] sm:$0xff]
    %v354 = vld [vmem:[#allocation2 + $0x230] sm:$0xff]
    %v355 = vld [vmem:[#allocation2 + $0x238] sm:$0xff]
    %v356 = vld [vmem:[#allocation2 + $0x240] sm:$0xff]
    %v357 = vld [vmem:[#allocation2 + $0x248] sm:$0xff]
    %v358 = vld [vmem:[#allocation2 + $0x250] sm:$0xff]
    %v359 = vld [vmem:[#allocation2 + $0x258] sm:$0xff]
    %v360 = vld [vmem:[#allocation2 + $0x260] sm:$0xff]
    %v361 = vld [vmem:[#allocation2 + $0x268] sm:$0xff]
    %v362 = vld [vmem:[#allocation2 + $0x270] sm:$0xff]
    %v363 = vld [vmem:[#allocation2 + $0x278] sm:$0xff]
    %v364 = vld [vmem:[#allocation2 + $0x280] sm:$0xff]
    %v365 = vld [vmem:[#allocation2 + $0x288] sm:$0xff]
    %v366 = vld [vmem:[#allocation2 + $0x290] sm:$0xff]
    %v367 = vld [vmem:[#allocation2 + $0x298] sm:$0xff]
    %v368 = vld [vmem:[#allocation2 + $0x2a0] sm:$0xff]
    %v369 = vld [vmem:[#allocation2 + $0x2a8] sm:$0xff]
    %370 = vset.pattern.permute.xlu0 7
    %371 = vperm.xlu0 %370, %v30
    %v372 = vpop.permute.xlu0 %371
    %vm373 = vcmp.eq.s32.totalorder %v28, %v372
    %v374 = vsel %vm373, 1, 0
    %v375 = vcvt.s32.f32 %v374
    %v377 = vsel %vm298, %v375, 0
    %379 = vmatpush.msra.mxu0 0.0
    %380 = vmatpush.msra.mxu0 0.0
    %381 = vmatpush.msra.mxu0 0.0
    %382 = vmatpush.msra.mxu0 0.0
    %383 = vmatpush.msra.mxu0 0.0
    %384 = vmatpush.msra.mxu0 0.0
    %385 = vmatpush.msra.mxu0 0.0
    %386 = vmatpush.msra.mxu0 0.0
    %387 = vmatpush.msra.mxu0 0.0
    %388 = vmatpush.msra.mxu0 0.0
    %389 = vmatpush.msra.mxu0 0.0
    %390 = vmatpush.msra.mxu0 %v349
    %391 = vmatpush.msra.mxu0 %v348
    %392 = vmatpush.msra.mxu0 %v347
    %393 = vmatpush.msra.mxu0 %v346
    %394 = vmatpush.msra.mxu0 %v345
    %395 = vmatmul.f32.gmra.mxu0 %v377
    %v396 = vpop.f32.mrf.mxu0
    %v397 = vadd.f32 0.0, %v396
    %398 = vdwg.mxu0
    %v399 = vadd.s32 %v285, 1
    %vm400 = vcmp.eq.s32.totalorder %v28, %v399
    %v401 = vsel %vm400, 1, 0
    %v402 = vcvt.s32.f32 %v401
    %vm403 = vcmask 130048
    %v405 = vsel %vm403, %v402, 0
    %407 = vmatpush.msra.mxu0 0.0
    %408 = vmatpush.msra.mxu0 0.0
    %409 = vmatpush.msra.mxu0 0.0
    %410 = vmatpush.msra.mxu0 0.0
    %411 = vmatpush.msra.mxu0 0.0
    %412 = vmatpush.msra.mxu0 0.0
    %413 = vmatpush.msra.mxu0 0.0
    %414 = vmatpush.msra.mxu0 0.0
    %415 = vmatpush.msra.mxu0 0.0
    %416 = vmatpush.msra.mxu0 0.0
    %417 = vmatpush.msra.mxu0 0.0
    %418 = vmatpush.msra.mxu0 0.0
    %419 = vmatpush.msra.mxu0 0.0
    %420 = vmatpush.msra.mxu0 0.0
    %421 = vmatpush.msra.mxu0 %v351
    %422 = vmatpush.msra.mxu0 %v350
    %423 = vmatmul.f32.gmra.mxu0 %v405
    %v424 = vpop.f32.mrf.mxu0
    %v425 = vadd.f32 0.0, %v424
    %426 = vdwg.mxu0
    %427 = vmatpush.msra.mxu0 0.0
    %428 = vmatpush.msra.mxu0 0.0
    %429 = vmatpush.msra.mxu0 0.0
    %430 = vmatpush.msra.mxu0 0.0
    %431 = vmatpush.msra.mxu0 0.0
    %432 = vmatpush.msra.mxu0 0.0
    %433 = vmatpush.msra.mxu0 0.0
    %434 = vmatpush.msra.mxu0 0.0
    %435 = vmatpush.msra.mxu0 0.0
    %436 = vmatpush.msra.mxu0 0.0
    %437 = vmatpush.msra.mxu0 0.0
    %438 = vmatpush.msra.mxu0 0.0
    %439 = vmatpush.msra.mxu0 0.0
    %440 = vmatpush.msra.mxu0 0.0
    %441 = vmatpush.msra.mxu0 %v353
    %442 = vmatpush.msra.mxu0 %v352
    %443 = vmatmul.f32.gmra.mxu0 %v405
    %v444 = vpop.f32.mrf.mxu0
    %v445 = vadd.f32 0.0, %v444
    %446 = vdwg.mxu0
    %v447 = vmul.f32 %v397, %v445
    %448 = vadd.xlane.f32.xlu0 %v447
    %v449 = vpop.xlane.xlu0 %448
    %v450 = vmul.f32 %v445, %v449
    %v451 = vsub.f32 %v397, %v450
    %v452 = vadd.f32 %v451, %v425
    %v453 = vmul.f32 %v452, %v445
    %454 = vadd.xlane.f32.xlu0 %v453
    %v455 = vpop.xlane.xlu0 %454
    %v456 = vmul.f32 %v455, %v445
    %v457 = vsub.f32 %v452, %v456
    %vm458 = vcmp.eq.s32.totalorder %v28, 64
    %v459 = vsel %vm458, 1, 0
    %v460 = vcvt.s32.f32 %v459
    %v461 = vstv %s344
    %v462 = vmul.f32 %v461, %v460
    %463 = vmatpush.msra.mxu0 %v369
    %464 = vmatpush.msra.mxu0 %v368
    %465 = vmatpush.msra.mxu0 %v367
    %466 = vmatpush.msra.mxu0 %v366
    %467 = vmatpush.msra.mxu0 %v365
    %468 = vmatpush.msra.mxu0 %v364
    %469 = vmatpush.msra.mxu0 %v363
    %470 = vmatpush.msra.mxu0 %v362
    %471 = vmatpush.msra.mxu0 %v361
    %472 = vmatpush.msra.mxu0 %v360
    %473 = vmatpush.msra.mxu0 %v359
    %474 = vmatpush.msra.mxu0 %v358
    %475 = vmatpush.msra.mxu0 %v357
    %476 = vmatpush.msra.mxu0 %v356
    %477 = vmatpush.msra.mxu0 %v355
    %478 = vmatpush.msra.mxu0 %v354
    %479 = vmatmul.f32.gmra.mxu0 %v457
    %v480 = vpop.f32.mrf.mxu0
    %v481 = vadd.f32 %v462, %v480
    %482 = vdwg.mxu0
    %483 = vst [vmem:[%s2] sm:$0xff] %v481
    // Predicated region
    $region14: #{rnn_forward.1} parent=1 // pred_check
      _
    $region15: #{rnn_forward.1} parent=1 // pred_check_branch
      %485 = sbr.rel (0) target = $region17
    $region16: #{rnn_forward.1} parent=1 // pred_region
      _
    $region17: #{rnn_forward.1} parent=1 // pred_fallthru
      _
    // Predicated region
    $region18: #{rnn_forward.1} parent=1 // pred_check
      _
    $region19: #{rnn_forward.1} parent=1 // pred_check_branch
      %487 = sbr.rel (0) target = $region21
    $region20: #{rnn_forward.1} parent=1 // pred_region
      _
    $region21: #{rnn_forward.1} parent=1 // pred_fallthru
      _
    %488 = vsyncpa [#allocation3], 1

</llo_original>
